<compile_context>
chip_gen: v5e
topology: v5e:2x2
jax: 0.10.0
libtpu: 0.0.40
codegen_flags: <defaults>
</compile_context>

<pallas_src>
import functools

import jax
import jax.numpy as jnp
from jax import lax
from jax.experimental import pallas as pl
from jax.experimental.pallas import tpu as pltpu


_NEG_BIG = -1e30  # effectively -inf for the softmax mask (avoids inf-inf NaN paths)


def _round_up(x, m):
    return (x + m - 1) // m * m


def _default_tanh_dtype():
    """bf16 tanh on chips with a bf16 EUP (v6e/v7x); f32 elsewhere (v5e, CPU)."""
    try:
        kind = jax.devices()[0].device_kind.lower()
    except Exception:
        return jnp.float32
    if "v6" in kind or "v7" in kind:
        return jnp.bfloat16
    return jnp.float32


def attention_kernel(hidden_ref, enc_ref, w_h_ref, w_e_ref, b_ref, v_ref,
                     out_ref, hproj_scr, scores_scr,
                     *, s_valid, num_s_chunks, tanh_dtype):
    # hidden_ref : (Bt, D)        matmul dtype (bf16 by default)
    # enc_ref    : (St, Bt, E2)   matmul dtype, native [S, B, E2] layout (no transpose)
    # w_h_ref    : (D, D)         matmul dtype (hidden rows of fc_attn.weight.T)
    # w_e_ref    : (E2, D)        matmul dtype (encoder rows of fc_attn.weight.T)
    # b_ref      : (1, D)   f32   fc_attn.bias
    # v_ref      : (1,1,D)  f32   fc_v.weight (lane-major; applied on the VPU/XLU)
    # out_ref    : (Bt, S_out) f32, lane-dense (S padded up to >=128)
    # hproj_scr  : (Bt, D)  f32   hidden @ W_h + b, reused across all S chunks
    # scores_scr : (Bt, S_out) f32
    si = pl.program_id(1)
    n_s = pl.num_programs(1)

    @pl.when(si == 0)
    def _init():
        hp = jnp.dot(hidden_ref[...], w_h_ref[...],
                     preferred_element_type=jnp.float32)              # (Bt, D) f32
        hproj_scr[...] = hp + b_ref[...]
        scores_scr[...] = jnp.full(scores_scr.shape, _NEG_BIG, jnp.float32)

    st, bt, e2 = enc_ref.shape
    # Layout-preserving flatten (bt is a multiple of 8) -> one clean 2-D MXU matmul.
    enc2d = enc_ref[...].reshape(st * bt, e2)
    e_proj = jnp.dot(enc2d, w_e_ref[...],
                     preferred_element_type=jnp.float32)              # (St*Bt, D) f32
    e_proj = e_proj.reshape(st, bt, -1)                               # (St, Bt, D)

    # tanh in bf16 on v6e/v7x (bf16 EUP), f32 on v5e; accumulation back in f32.
    energy = jnp.tanh((e_proj + hproj_scr[...][None, :, :]).astype(tanh_dtype))
    # fc_v as a VPU multiply + lane reduce (avoids an N=1 MXU matmul).
    sc_sb = jnp.sum(energy.astype(jnp.float32) * v_ref[...], axis=-1)  # (St, Bt)
    sc_bt = sc_sb.T                                                    # (Bt, St)

    if num_s_chunks == 1:
        scores_scr[:, 0:st] = sc_bt                                    # static store
    else:
        off = pl.multiple_of(si * st, st)                              # st is 256-aligned
        scores_scr[:, pl.ds(off, st)] = sc_bt

    @pl.when(si == n_s - 1)
    def _finalize():
        lane = lax.broadcasted_iota(jnp.int32, scores_scr.shape, 1)
        scores = jnp.where(lane < s_valid, scores_scr[...], _NEG_BIG)
        m = jnp.max(scores, axis=-1, keepdims=True)
        e = jnp.exp(scores - m)
        denom = jnp.sum(e, axis=-1, keepdims=True)
        out_ref[...] = (e * pl.reciprocal(denom, approx=True)).astype(out_ref.dtype)


def _pick_b_tile(b_pad, fixed_bytes, per_row_bytes, budget_bytes):
    """Largest multiple-of-8 tile dividing b_pad that fits the VMEM budget and,
    when b_pad >= 16, leaves >= 2 grid steps for megacore sharding (v7x)."""
    best = 8
    cand = 8
    while cand <= min(b_pad, 512):
        if b_pad % cand == 0:
            steps = b_pad // cand
            fits = fixed_bytes + cand * per_row_bytes <= budget_bytes
            parallel_ok = (b_pad < 16) or (steps >= 2)
            if fits and parallel_ok:
                best = cand
        cand += 8
    return best


def attention_forward(hidden, encoder_outputs, w_attn, b_attn, w_v, *,
                      matmul_dtype=jnp.bfloat16, tanh_dtype=None):
    """
    hidden           : [B, dec_hid]
    encoder_outputs  : [S, B, 2*enc_hid]      (native layout, NOT transposed)
    w_attn           : [dec_hid, 2*enc_hid + dec_hid]  (PyTorch fc_attn.weight, out x in)
    b_attn           : [dec_hid]
    w_v              : [1, dec_hid]           (PyTorch fc_v.weight)
    returns          : [B, S]  (softmax over S, f32)
    """
    S, B, E2 = encoder_outputs.shape
    D = hidden.shape[1]
    if tanh_dtype is None:
        tanh_dtype = _default_tanh_dtype()

    # Split fc_attn.weight.T along the input axis; concat order is [hidden | encoder].
    w_t = w_attn.T                                   # (D + E2, D)
    w_h = w_t[:D, :].astype(matmul_dtype)            # (D, D)
    w_e = w_t[D:, :].astype(matmul_dtype)            # (E2, D)
    b = b_attn.reshape(1, D).astype(jnp.float32)     # (1, D)
    v = w_v.reshape(1, 1, D).astype(jnp.float32)     # (1, 1, D)

    # Cast MXU operands once in HBM (halves enc DMA + VMEM); post-matmul math stays f32.
    hidden_c = hidden.astype(matmul_dtype)
    enc_c = encoder_outputs.astype(matmul_dtype)

    # Pad batch to a sublane multiple so the (St*Bt, E2) flatten is layout-preserving.
    b_pad = _round_up(max(B, 8), 8)
    if b_pad != B:
        hidden_c = jnp.pad(hidden_c, ((0, b_pad - B), (0, 0)))
        enc_c = jnp.pad(enc_c, ((0, 0), (0, b_pad - B), (0, 0)))

    # S chunking: bounded per-chunk working set (no (S, Bt, D) f32 live value).
    if S <= 256:
        s_tile, s_grid = S, S
    else:
        s_tile = 256
        s_grid = _round_up(S, s_tile)
        enc_c = jnp.pad(enc_c, ((0, s_grid - S), (0, 0), (0, 0)))
    num_s_chunks = s_grid // s_tile

    s_out = max(_round_up(s_grid, 128), 128)         # lane-dense output/scratch width

    # VMEM-budgeted batch tile (double-buffered inputs/outputs + f32 temporaries).
    in_bytes = jnp.dtype(matmul_dtype).itemsize
    per_row = (2 * s_tile * E2 * in_bytes            # enc block (x2 pipeline buffers)
               + 2 * D * in_bytes                    # hidden block
               + D * 4 + s_out * 4                   # scratches
               + 2 * s_out * 4                       # output block
               + 3 * s_tile * D * 4)                 # f32 per-chunk temporaries
    fixed = 2 * (D * D + E2 * D) * in_bytes + 4 * D * 4   # weights + bias + v
    vmem_budget = 28 << 20                           # fits v7x's 64 MiB with headroom
    b_tile = _pick_b_tile(b_pad, fixed, per_row, vmem_budget)

    grid = (b_pad // b_tile, num_s_chunks)

    kernel = functools.partial(attention_kernel, s_valid=S,
                               num_s_chunks=num_s_chunks, tanh_dtype=tanh_dtype)

    out = pl.pallas_call(
        kernel,
        out_shape=jax.ShapeDtypeStruct((b_pad, s_out), jnp.float32),
        grid_spec=pltpu.PrefetchScalarGridSpec(
            num_scalar_prefetch=0,
            grid=grid,
            in_specs=[
                pl.BlockSpec((b_tile, D), lambda i, s: (i, 0)),            # hidden
                pl.BlockSpec((s_tile, b_tile, E2), lambda i, s: (s, i, 0)),  # enc (native)
                pl.BlockSpec((D, D), lambda i, s: (0, 0)),                 # w_h
                pl.BlockSpec((E2, D), lambda i, s: (0, 0)),                # w_e
                pl.BlockSpec((1, D), lambda i, s: (0, 0)),                 # bias
                pl.BlockSpec((1, 1, D), lambda i, s: (0, 0, 0)),           # v
            ],
            out_specs=pl.BlockSpec((b_tile, s_out), lambda i, s: (i, 0)),
            scratch_shapes=[
                pltpu.VMEM((b_tile, D), jnp.float32),       # hidden projection
                pltpu.VMEM((b_tile, s_out), jnp.float32),   # scores accumulator
            ],
        ),
        compiler_params=pltpu.CompilerParams(
            dimension_semantics=("parallel", "arbitrary"),
            vmem_limit_bytes=48 << 20,
        ),
    )(hidden_c, enc_c, w_h, w_e, b, v)

    return out[:B, :S]


def attention_ref(hidden, encoder_outputs, w_attn, b_attn, w_v):
    """Pure-JAX reference mirroring the PyTorch forward (f32 throughout)."""
    S = encoder_outputs.shape[0]
    h = jnp.repeat(hidden[:, None, :], S, axis=1)             # (B, S, D)
    enc = jnp.transpose(encoder_outputs, (1, 0, 2))           # (B, S, E2)
    cat = jnp.concatenate([h, enc], axis=2)                   # (B, S, D+E2)
    energy = jnp.tanh(cat @ w_attn.T + b_attn)                # (B, S, D)
    attn = (energy @ w_v.T)[..., 0]                           # (B, S)
    return jax.nn.softmax(attn, axis=1)


if __name__ == "__main__":
    enc_hid_dim = 16
    dec_hid_dim = 32
    batch = 2
    src_len = 8

    key = jax.random.PRNGKey(0)
    k1, k2, k3, k4, k5 = jax.random.split(key, 5)

    # Module parameters (deterministic synthetic init; shapes from nn.Linear defs).
    in_dim = enc_hid_dim * 2 + dec_hid_dim
    w_attn = jax.random.normal(k1, (dec_hid_dim, in_dim), dtype=jnp.float32) * 0.1
    b_attn = jax.random.normal(k2, (dec_hid_dim,), dtype=jnp.float32) * 0.1
    w_v = jax.random.normal(k3, (1, dec_hid_dim), dtype=jnp.float32) * 0.1

    # Inputs.
    hidden = jax.random.normal(k4, (batch, dec_hid_dim), dtype=jnp.float32)
    encoder_outputs = jax.random.normal(
        k5, (src_len, batch, enc_hid_dim * 2), dtype=jnp.float32
    )

    out = attention_forward(hidden, encoder_outputs, w_attn, b_attn, w_v)
    out = jax.block_until_ready(out)

    ref = attention_ref(hidden, encoder_outputs, w_attn, b_attn, w_v)
    assert out.shape == (batch, src_len)
    # Tolerances cover bf16 MXU operands, (optional) bf16 tanh, and the approx
    # EUP reciprocal in the softmax.
    assert jnp.allclose(out, ref, atol=2e-2, rtol=2e-2), "mismatch vs reference"
    assert jnp.allclose(jnp.sum(out, axis=1), 1.0, atol=1e-2), "softmax rows must sum to ~1"

    print("KERNEL_OK")
</pallas_src>

<mosaic_0001>
module attributes {stable_mosaic.version = 11 : i64} {
  func.func @attention_kernel(%arg0: i32, %arg1: i32, %arg2: memref<8x32xbf16, #tpu.memory_space<vmem>>, %arg3: memref<8x8x32xbf16, #tpu.memory_space<vmem>>, %arg4: memref<32x32xbf16, #tpu.memory_space<vmem>>, %arg5: memref<32x32xbf16, #tpu.memory_space<vmem>>, %arg6: memref<1x32xf32, #tpu.memory_space<vmem>>, %arg7: memref<1x1x32xf32, #tpu.memory_space<vmem>>, %arg8: memref<8x128xf32, #tpu.memory_space<vmem>>, %arg9: memref<8x32xf32, #tpu.memory_space<vmem>>, %arg10: memref<8x128xf32, #tpu.memory_space<vmem>>) attributes {dimension_semantics = [#tpu.dimension_semantics<parallel>, #tpu.dimension_semantics<arbitrary>], iteration_bounds = array<i64: 1, 1>, scalar_prefetch = 0 : i64, scratch_operands = 2 : i64, tpu.core_type = #tpu.core_type<tc>, window_params = [{transform_indices = @transform_0, window_bounds = array<i64: 8, 32>}, {transform_indices = @transform_1, window_bounds = array<i64: 8, 8, 32>}, {pipeline_mode = #tpu.pipeline_mode<synchronous>, transform_indices = @transform_2, window_bounds = array<i64: 32, 32>}, {pipeline_mode = #tpu.pipeline_mode<synchronous>, transform_indices = @transform_3, window_bounds = array<i64: 32, 32>}, {pipeline_mode = #tpu.pipeline_mode<synchronous>, transform_indices = @transform_4, window_bounds = array<i64: 1, 32>}, {pipeline_mode = #tpu.pipeline_mode<synchronous>, transform_indices = @transform_5, window_bounds = array<i64: 1, 1, 32>}, {transform_indices = @transform_6, window_bounds = array<i64: 8, 128>}]} {
    %c0_i32 = arith.constant 0 : i32
    %0 = arith.cmpi eq, %arg1, %c0_i32 : i32
    %1 = arith.extui %0 : i1 to i32
    %c0_i32_0 = arith.constant 0 : i32
    %2 = arith.cmpi ne, %1, %c0_i32_0 : i32
    scf.if %2 {
      %c0_15 = arith.constant 0 : index
      %c0_16 = arith.constant 0 : index
      %22 = vector.load %arg2[%c0_15, %c0_16] : memref<8x32xbf16, #tpu.memory_space<vmem>>, vector<8x32xbf16>
      %c0_17 = arith.constant 0 : index
      %c0_18 = arith.constant 0 : index
      %23 = vector.load %arg4[%c0_17, %c0_18] : memref<32x32xbf16, #tpu.memory_space<vmem>>, vector<32x32xbf16>
      %cst_19 = arith.constant dense<0.000000e+00> : vector<8x32xf32>
      %24 = tpu.matmul %22, %23, %cst_19 {dimension_numbers = #tpu.dot_dimension_numbers<[1], [0], [0], [1], [0, 0, 1, 1], [], []>} : vector<8x32xbf16>, vector<32x32xbf16>, vector<8x32xf32> -> vector<8x32xf32>
      %c0_20 = arith.constant 0 : index
      %c0_21 = arith.constant 0 : index
      %25 = vector.load %arg6[%c0_20, %c0_21] : memref<1x32xf32, #tpu.memory_space<vmem>>, vector<1x32xf32>
      %26 = vector.broadcast %25 : vector<1x32xf32> to vector<8x32xf32>
      %27 = arith.addf %24, %26 : vector<8x32xf32>
      %c0_22 = arith.constant 0 : index
      %c0_23 = arith.constant 0 : index
      %28 = vector.load %arg9[%c0_22, %c0_23] : memref<8x32xf32, #tpu.memory_space<vmem>>, vector<8x32xf32>
      tpu.vector_store %arg9[%c0_22, %c0_23], %27 {strides = array<i32>} : memref<8x32xf32, #tpu.memory_space<vmem>>, vector<8x32xf32>,
      %cst_24 = arith.constant -1.000000e+30 : f32
      %29 = vector.broadcast %cst_24 : f32 to vector<8x128xf32>
      %c0_25 = arith.constant 0 : index
      %c0_26 = arith.constant 0 : index
      %30 = vector.load %arg10[%c0_25, %c0_26] : memref<8x128xf32, #tpu.memory_space<vmem>>, vector<8x128xf32>
      tpu.vector_store %arg10[%c0_25, %c0_26], %29 {strides = array<i32>} : memref<8x128xf32, #tpu.memory_space<vmem>>, vector<8x128xf32>,
    } else {
    }
    %c0 = arith.constant 0 : index
    %c0_1 = arith.constant 0 : index
    %c0_2 = arith.constant 0 : index
    %3 = vector.load %arg3[%c0, %c0_1, %c0_2] : memref<8x8x32xbf16, #tpu.memory_space<vmem>>, vector<8x8x32xbf16>
    %4 = vector.shape_cast %3 : vector<8x8x32xbf16> to vector<64x32xbf16>
    %c0_3 = arith.constant 0 : index
    %c0_4 = arith.constant 0 : index
    %5 = vector.load %arg5[%c0_3, %c0_4] : memref<32x32xbf16, #tpu.memory_space<vmem>>, vector<32x32xbf16>
    %cst = arith.constant dense<0.000000e+00> : vector<64x32xf32>
    %6 = tpu.matmul %4, %5, %cst {dimension_numbers = #tpu.dot_dimension_numbers<[1], [0], [0], [1], [0, 0, 1, 1], [], []>} : vector<64x32xbf16>, vector<32x32xbf16>, vector<64x32xf32> -> vector<64x32xf32>
    %7 = vector.shape_cast %6 : vector<64x32xf32> to vector<8x8x32xf32>
    %c0_5 = arith.constant 0 : index
    %c0_6 = arith.constant 0 : index
    %8 = vector.load %arg9[%c0_5, %c0_6] : memref<8x32xf32, #tpu.memory_space<vmem>>, vector<8x32xf32>
    %9 = vector.shape_cast %8 : vector<8x32xf32> to vector<1x8x32xf32>
    %10 = vector.broadcast %9 : vector<1x8x32xf32> to vector<8x8x32xf32>
    %11 = arith.addf %7, %10 : vector<8x8x32xf32>
    %12 = math.tanh %11 : vector<8x8x32xf32>
    %c0_7 = arith.constant 0 : index
    %c0_8 = arith.constant 0 : index
    %c0_9 = arith.constant 0 : index
    %13 = vector.load %arg7[%c0_7, %c0_8, %c0_9] : memref<1x1x32xf32, #tpu.memory_space<vmem>>, vector<1x1x32xf32>
    %14 = vector.broadcast %13 : vector<1x1x32xf32> to vector<8x8x32xf32>
    %15 = arith.mulf %12, %14 : vector<8x8x32xf32>
    %cst_10 = arith.constant dense<0.000000e+00> : vector<8x8xf32>
    %16 = vector.multi_reduction <add>, %15, %cst_10 [2] : vector<8x8x32xf32> to vector<8x8xf32>
    %17 = tpu.transpose %16, [1, 0] : vector<8x8xf32> -> vector<8x8xf32>
    %c0_11 = arith.constant 0 : index
    %c0_12 = arith.constant 0 : index
    %18 = vector.load %arg10[%c0_11, %c0_12] : memref<8x128xf32, #tpu.memory_space<vmem>>, vector<8x8xf32>
    tpu.vector_store %arg10[%c0_11, %c0_12], %17 {strides = array<i32>} : memref<8x128xf32, #tpu.memory_space<vmem>>, vector<8x8xf32>,
    %c0_i32_13 = arith.constant 0 : i32
    %19 = arith.cmpi eq, %arg1, %c0_i32_13 : i32
    %20 = arith.extui %19 : i1 to i32
    %c0_i32_14 = arith.constant 0 : i32
    %21 = arith.cmpi ne, %20, %c0_i32_14 : i32
    scf.if %21 {
      %22 = tpu.iota {dimensions = array<i32: 1>} : vector<8x128xi32>
      %c8_i32 = arith.constant 8 : i32
      %23 = vector.broadcast %c8_i32 : i32 to vector<8x128xi32>
      %24 = arith.cmpi slt, %22, %23 : vector<8x128xi32>
      %c0_15 = arith.constant 0 : index
      %c0_16 = arith.constant 0 : index
      %25 = vector.load %arg10[%c0_15, %c0_16] : memref<8x128xf32, #tpu.memory_space<vmem>>, vector<8x128xf32>
      %cst_17 = arith.constant -1.000000e+30 : f32
      %26 = vector.broadcast %cst_17 : f32 to vector<8x128xf32>
      %27 = arith.select %24, %25, %26 : vector<8x128xi1>, vector<8x128xf32>
      %cst_18 = arith.constant dense<0xFF800000> : vector<8xf32>
      %28 = vector.multi_reduction <maximumf>, %27, %cst_18 [1] : vector<8x128xf32> to vector<8xf32>
      %29 = vector.shape_cast %28 : vector<8xf32> to vector<8x1xf32>
      %30 = vector.broadcast %29 : vector<8x1xf32> to vector<8x128xf32>
      %31 = arith.subf %27, %30 : vector<8x128xf32>
      %32 = math.exp %31 : vector<8x128xf32>
      %cst_19 = arith.constant dense<0.000000e+00> : vector<8xf32>
      %33 = vector.multi_reduction <add>, %32, %cst_19 [1] : vector<8x128xf32> to vector<8xf32>
      %34 = vector.shape_cast %33 : vector<8xf32> to vector<8x1xf32>
      %35 = tpu.reciprocal %34 {approx = true} : vector<8x1xf32> -> vector<8x1xf32>
      %36 = vector.broadcast %35 : vector<8x1xf32> to vector<8x128xf32>
      %37 = arith.mulf %32, %36 : vector<8x128xf32>
      %c0_20 = arith.constant 0 : index
      %c0_21 = arith.constant 0 : index
      %38 = vector.load %arg8[%c0_20, %c0_21] : memref<8x128xf32, #tpu.memory_space<vmem>>, vector<8x128xf32>
      tpu.vector_store %arg8[%c0_20, %c0_21], %37 {strides = array<i32>} : memref<8x128xf32, #tpu.memory_space<vmem>>, vector<8x128xf32>,
    } else {
    }
    return
  }
  func.func @transform_0(%arg0: i32, %arg1: i32) -> (i32, i32) {
    %c0_i32 = arith.constant 0 : i32
    %c0_i32_0 = arith.constant 0 : i32
    return %arg0, %c0_i32 : i32, i32
  }
  func.func @transform_1(%arg0: i32, %arg1: i32) -> (i32, i32, i32) {
    %c0_i32 = arith.constant 0 : i32
    %c0_i32_0 = arith.constant 0 : i32
    return %arg1, %arg0, %c0_i32 : i32, i32, i32
  }
  func.func @transform_2(%arg0: i32, %arg1: i32) -> (i32, i32) {
    %c0_i32 = arith.constant 0 : i32
    %c0_i32_0 = arith.constant 0 : i32
    %c0_i32_1 = arith.constant 0 : i32
    return %c0_i32, %c0_i32_0 : i32, i32
  }
  func.func @transform_3(%arg0: i32, %arg1: i32) -> (i32, i32) {
    %c0_i32 = arith.constant 0 : i32
    %c0_i32_0 = arith.constant 0 : i32
    %c0_i32_1 = arith.constant 0 : i32
    return %c0_i32, %c0_i32_0 : i32, i32
  }
  func.func @transform_4(%arg0: i32, %arg1: i32) -> (i32, i32) {
    %c0_i32 = arith.constant 0 : i32
    %c0_i32_0 = arith.constant 0 : i32
    %c0_i32_1 = arith.constant 0 : i32
    return %c0_i32, %c0_i32_0 : i32, i32
  }
  func.func @transform_5(%arg0: i32, %arg1: i32) -> (i32, i32, i32) {
    %c0_i32 = arith.constant 0 : i32
    %c0_i32_0 = arith.constant 0 : i32
    %c0_i32_1 = arith.constant 0 : i32
    %c0_i32_2 = arith.constant 0 : i32
    return %c0_i32, %c0_i32_0, %c0_i32_1 : i32, i32, i32
  }
  func.func @transform_6(%arg0: i32, %arg1: i32) -> (i32, i32) {
    %c0_i32 = arith.constant 0 : i32
    %c0_i32_0 = arith.constant 0 : i32
    return %arg0, %c0_i32 : i32, i32
  }
}

</mosaic_0001>

<llo_original>
// kernel: tpu_custom_call.1
$region0: #{tpu_custom_call.1}
  #allocation0 [shape = 'u32[]', space=smem, size = 0x4, offset = 0x4, fixed_abs, tag = 'smem constant byte address 0x4 - core index']
  #allocation1 [shape = 'u32[72,128]{1,0:T(1,128)}', space=vmem, size = 0x9000, scoped, tag = 'internal scratch']
  #allocation2 [shape = 'f32[8,32]{1,0:T(8,128)}', space=vmem, size = 0x1000, scoped, tag = 'scratch operand']
  #allocation3 [shape = 'f32[8,128]{1,0:T(8,128)}', space=vmem, size = 0x1000, scoped, tag = 'scratch operand']
  %s0 = inlined_call_operand.hbm [shape: bf16[8,32], index: 0, kind: input, shape index: {}]
  %s1 = inlined_call_operand.hbm [shape: bf16[8,8,32], index: 1, kind: input, shape index: {}]
  %s2 = inlined_call_operand.hbm [shape: bf16[32,32], index: 2, kind: input, shape index: {}]
  %s3 = inlined_call_operand.hbm [shape: bf16[32,32], index: 3, kind: input, shape index: {}]
  %s4 = inlined_call_operand.vmem [shape: f32[1,32], index: 4, kind: input, shape index: {}]
  %s5 = inlined_call_operand.vmem [shape: f32[1,1,32], index: 5, kind: input, shape index: {}]
  %s6 = inlined_call_operand.hbm [shape: f32[8,128], index: 6, kind: output, shape index: {}]
  %s7 = sld [smem:[#allocation0]]
  $region58: #{tpu_custom_call.1} parent=0
    _
  %s9 = ssub.s32 1, %s7
  %s10 = scalar_select 0, %s9, %s7
  $region1: #{tpu_custom_call.1} parent=0
    #allocation4 [shape = 'u8[2048]{0}', space=vmem, size = 0x800, scoped, tag = 'input window, operand 0, single buffered']
    #allocation5 [shape = 's32[1]{0}', space=sflag, size = 0x4, scoped, tag = 'scoped memory for tpu_custom_call.1']
    #allocation6 [shape = 's32[1]{0}', space=sflag, size = 0x4, scoped, tag = 'scoped memory for tpu_custom_call.1']
    #allocation7 [shape = 'u8[16384]{0}', space=vmem, size = 0x4000, scoped, tag = 'input window, operand 1, single buffered']
    #allocation8 [shape = 's32[1]{0}', space=sflag, size = 0x4, scoped, tag = 'scoped memory for tpu_custom_call.1']
    #allocation9 [shape = 'u8[8192]{0}', space=vmem, size = 0x2000, scoped, tag = 'input window, operand 2, single buffered']
    #allocation10 [shape = 'u8[8192]{0}', space=vmem, size = 0x2000, scoped, tag = 'input window, operand 3, single buffered']
    #allocation11 [shape = 's32[1]{0}', space=sflag, size = 0x4, scoped, tag = 'scoped memory for tpu_custom_call.1']
    #allocation12 [shape = 'u8[4096]{0}', space=vmem, size = 0x1000, scoped, tag = 'output window, operand 0, single buffered']
    %11 = vsyncpa [#allocation5], 0
    %12 = vsyncpa [#allocation8], 0
    %13 = vsyncpa [#allocation11], 0
    %14 = vsyncpa [#allocation6], 0
    // Predicated region
    $region2: #{tpu_custom_call.1} parent=1 // pred_check
      _
    $region3: #{tpu_custom_call.1} parent=1 // pred_check_branch
      %16 = sbr.rel (0) target = $region5
    $region4: #{tpu_custom_call.1} parent=1 // pred_region
      %18 = vsyncadd [#allocation5], 0
      %s20 = sshll.u32 %s0, 4
      %s21 = int_to_ptr.hbm [resolvable:$true] %s20
      %s22 = sshll.u32 [#allocation4], 4
      %s23 = int_to_ptr.vmem [resolvable:$true] %s22
      %25 = dma.hbm_to_vmem [thread:$0]  %s21, 64, %s23, [#allocation5]
    $region5: #{tpu_custom_call.1} parent=1 // pred_fallthru
      _
    // Predicated region
    $region6: #{tpu_custom_call.1} parent=1 // pred_check
      _
    $region7: #{tpu_custom_call.1} parent=1 // pred_check_branch
      %27 = sbr.rel (0) target = $region9
    $region8: #{tpu_custom_call.1} parent=1 // pred_region
      %29 = vsyncadd [#allocation8], 0
      %s30 = sshll.u32 %s1, 4
      %s31 = int_to_ptr.hbm [resolvable:$true] %s30
      %s32 = sshll.u32 [#allocation7], 4
      %s33 = int_to_ptr.vmem [resolvable:$true] %s32
      %38 = dma.hbm_to_vmem [thread:$0]  %s31, 512, %s33, [#allocation8], 64, 64, 4
    $region9: #{tpu_custom_call.1} parent=1 // pred_fallthru
      _
    // Predicated region
    $region10: #{tpu_custom_call.1} parent=1 // pred_check
      _
    $region11: #{tpu_custom_call.1} parent=1 // pred_check_branch
      %40 = sbr.rel (0) target = $region13
    $region12: #{tpu_custom_call.1} parent=1 // pred_region
      %42 = vsyncadd [#allocation8], 0
      %s43 = sshll.u32 %s2, 4
      %s44 = int_to_ptr.hbm [resolvable:$true] %s43
      %s45 = sshll.u32 [#allocation9], 4
      %s46 = int_to_ptr.vmem [resolvable:$true] %s45
      %51 = dma.hbm_to_vmem [thread:$0]  %s44, 256, %s46, [#allocation8], 64, 64, 4
    $region13: #{tpu_custom_call.1} parent=1 // pred_fallthru
      _
    // Predicated region
    $region14: #{tpu_custom_call.1} parent=1 // pred_check
      _
    $region15: #{tpu_custom_call.1} parent=1 // pred_check_branch
      %53 = sbr.rel (0) target = $region17
    $region16: #{tpu_custom_call.1} parent=1 // pred_region
      %55 = vsyncadd [#allocation11], 0
      %s56 = sshll.u32 %s3, 4
      %s57 = int_to_ptr.hbm [resolvable:$true] %s56
      %s58 = sshll.u32 [#allocation10], 4
      %s59 = int_to_ptr.vmem [resolvable:$true] %s58
      %64 = dma.hbm_to_vmem [thread:$0]  %s57, 256, %s59, [#allocation11], 64, 64, 4
    $region17: #{tpu_custom_call.1} parent=1 // pred_fallthru
      _
    // Predicated region
    $region18: #{tpu_custom_call.1} parent=1 // pred_check
      _
    $region19: #{tpu_custom_call.1} parent=1 // pred_check_branch
      %66 = sbr.rel (0) target = $region21
    $region20: #{tpu_custom_call.1} parent=1 // pred_region
      _
    $region21: #{tpu_custom_call.1} parent=1 // pred_fallthru
      _
    // Predicated region
    $region22: #{tpu_custom_call.1} parent=1 // pred_check
      _
    $region23: #{tpu_custom_call.1} parent=1 // pred_check_branch
      %68 = sbr.rel (0) target = $region25
    $region24: #{tpu_custom_call.1} parent=1 // pred_region
      _
    $region25: #{tpu_custom_call.1} parent=1 // pred_fallthru
      _
    // Predicated region
    $region26: #{tpu_custom_call.1} parent=1 // pred_check
      _
    $region27: #{tpu_custom_call.1} parent=1 // pred_check_branch
      %70 = sbr.rel (0) target = $region29
    $region28: #{tpu_custom_call.1} parent=1 // pred_region
      %72 = dma.done [#allocation5], 64
    $region29: #{tpu_custom_call.1} parent=1 // pred_fallthru
      _
    // Predicated region
    $region30: #{tpu_custom_call.1} parent=1 // pred_check
      _
    $region31: #{tpu_custom_call.1} parent=1 // pred_check_branch
      %74 = sbr.rel (0) target = $region33
    $region32: #{tpu_custom_call.1} parent=1 // pred_region
      %76 = dma.done [#allocation8], 512
    $region33: #{tpu_custom_call.1} parent=1 // pred_fallthru
      _
    // Predicated region
    $region34: #{tpu_custom_call.1} parent=1 // pred_check
      _
    $region35: #{tpu_custom_call.1} parent=1 // pred_check_branch
      %78 = sbr.rel (0) target = $region37
    $region36: #{tpu_custom_call.1} parent=1 // pred_region
      %80 = dma.done [#allocation8], 256
    $region37: #{tpu_custom_call.1} parent=1 // pred_fallthru
      _
    // Predicated region
    $region38: #{tpu_custom_call.1} parent=1 // pred_check
      _
    $region39: #{tpu_custom_call.1} parent=1 // pred_check_branch
      %82 = sbr.rel (0) target = $region41
    $region40: #{tpu_custom_call.1} parent=1 // pred_region
      %84 = dma.done [#allocation11], 256
    $region41: #{tpu_custom_call.1} parent=1 // pred_fallthru
      _
    %p86 = scmp.eq.s32.totalorder 0, 0
    // Predicated region
    $region42: #{tpu_custom_call.1} parent=1 // pred_check
      %p87 = pneg %p86
    $region43: #{tpu_custom_call.1} parent=1 // pred_check_branch
      %89 = sbr.rel (%p87) target = $region45
    $region44: #{tpu_custom_call.1} parent=1 // pred_region
      %v90 = vld [vmem:[#allocation4] sm:$0xf]
      %v91 = vld [vmem:[#allocation9] sm:$0xf]
      %v92 = vld [vmem:[#allocation9 + $0x4] sm:$0xf]
      %v93 = vld [vmem:[#allocation9 + $0x8] sm:$0xf]
      %v94 = vld [vmem:[#allocation9 + $0xc] sm:$0xf]
      %v95 = vld [vmem:[%s4] sm:$0x1]
      %v97 = vperm.slane %v95, 0
      %v103 = vunpack.c.l.b16 %v91
      %v104 = vunpack.c.l.b16 %v92
      %v105 = vunpack.c.l.b16 %v93
      %v106 = vunpack.c.l.b16 %v94
      %v107 = vpack.c.b16 %v104, %v103
      %v108 = vpack.c.b16 %v106, %v105
      %vm111 = vcmask 261120
      %v113 = vsel %vm111, %v90, 0
      %115 = vmatpush.bf16.msra.mxu0 0
      %116 = vmatpush.bf16.msra.mxu0 0
      %117 = vmatpush.bf16.msra.mxu0 0
      %118 = vmatpush.bf16.msra.mxu0 0
      %119 = vmatpush.bf16.msra.mxu0 0
      %120 = vmatpush.bf16.msra.mxu0 0
      %121 = vmatpush.bf16.msra.mxu0 %v108
      %122 = vmatpush.bf16.msra.mxu0 %v107
      %123 = vmatmul.bf16.gmra.mxu0 %v113
      %v124 = vpop.f32.mrf.mxu0
      %v125 = vadd.f32 %v97, %v124
      %v126 = vpop.f32.mrf.mxu0
      %127 = vdwg.mxu0
      %128 = vst.msk [vmem:[#allocation2] sm:$0xff] %vm111, %v125
      %129 = vst [vmem:[#allocation3] sm:$0xff] -1e+30
    $region45: #{tpu_custom_call.1} parent=1 // pred_fallthru
      _
    %v130 = vld [vmem:[#allocation7] sm:$0xf]
    %v131 = vld [vmem:[#allocation7 + $0x4] sm:$0xf]
    %v132 = vld [vmem:[#allocation7 + $0x8] sm:$0xf]
    %v133 = vld [vmem:[#allocation7 + $0xc] sm:$0xf]
    %v134 = vld [vmem:[#allocation7 + $0x10] sm:$0xf]
    %v135 = vld [vmem:[#allocation7 + $0x14] sm:$0xf]
    %v136 = vld [vmem:[#allocation7 + $0x18] sm:$0xf]
    %v137 = vld [vmem:[#allocation7 + $0x1c] sm:$0xf]
    %v138 = vld [vmem:[#allocation10] sm:$0xf]
    %v139 = vld [vmem:[#allocation10 + $0x4] sm:$0xf]
    %v140 = vld [vmem:[#allocation10 + $0x8] sm:$0xf]
    %v141 = vld [vmem:[#allocation10 + $0xc] sm:$0xf]
    %v150 = vunpack.c.l.b16 %v130
    %v151 = vunpack.c.l.b16 %v131
    %v152 = vunpack.c.l.b16 %v132
    %v153 = vunpack.c.l.b16 %v133
    %v154 = vunpack.c.l.b16 %v134
    %v155 = vunpack.c.l.b16 %v135
    %v156 = vunpack.c.l.b16 %v136
    %v157 = vunpack.c.l.b16 %v137
    %v158 = vpack.c.b16 %v151, %v150
    %v159 = vpack.c.b16 %v153, %v152
    %v160 = vpack.c.b16 %v155, %v154
    %v161 = vpack.c.b16 %v157, %v156
    %v166 = vunpack.c.l.b16 %v138
    %v167 = vunpack.c.l.b16 %v139
    %v168 = vunpack.c.l.b16 %v140
    %v169 = vunpack.c.l.b16 %v141
    %v170 = vpack.c.b16 %v167, %v166
    %v171 = vpack.c.b16 %v169, %v168
    %vm174 = vcmask 261120
    %v176 = vsel %vm174, %v158, 0
    %v179 = vsel %vm174, %v159, 0
    %v182 = vsel %vm174, %v160, 0
    %v185 = vsel %vm174, %v161, 0
    %187 = vmatpush.bf16.msra.mxu0 0
    %188 = vmatpush.bf16.msra.mxu0 0
    %189 = vmatpush.bf16.msra.mxu0 0
    %190 = vmatpush.bf16.msra.mxu0 0
    %191 = vmatpush.bf16.msra.mxu0 0
    %192 = vmatpush.bf16.msra.mxu0 0
    %193 = vmatpush.bf16.msra.mxu0 %v171
    %194 = vmatpush.bf16.msra.mxu0 %v170
    %195 = vmatmul.bf16.gmra.mxu0 %v176
    %v196 = vpop.f32.mrf.mxu0
    %v197 = vadd.f32 0.0, %v196
    %v198 = vpop.f32.mrf.mxu0
    %v199 = vadd.f32 0.0, %v198
    %200 = vmatmul.bf16.gmra.mxu0 %v179
    %v201 = vpop.f32.mrf.mxu0
    %v202 = vadd.f32 0.0, %v201
    %v203 = vpop.f32.mrf.mxu0
    %v204 = vadd.f32 0.0, %v203
    %205 = vmatmul.bf16.gmra.mxu0 %v182
    %v206 = vpop.f32.mrf.mxu0
    %v207 = vadd.f32 0.0, %v206
    %v208 = vpop.f32.mrf.mxu0
    %v209 = vadd.f32 0.0, %v208
    %210 = vmatmul.bf16.gmra.mxu0 %v185
    %v211 = vpop.f32.mrf.mxu0
    %v212 = vadd.f32 0.0, %v211
    %v213 = vpop.f32.mrf.mxu0
    %v214 = vadd.f32 0.0, %v213
    %215 = vdwg.mxu0
    %v216 = vld [vmem:[#allocation2] sm:$0xff]
    %v217 = vadd.f32 %v197, %v216
    %v218 = vadd.f32 %v199, %v216
    %v219 = vadd.f32 %v202, %v216
    %v220 = vadd.f32 %v204, %v216
    %v221 = vadd.f32 %v207, %v216
    %v222 = vadd.f32 %v209, %v216
    %v223 = vadd.f32 %v212, %v216
    %v224 = vadd.f32 %v214, %v216
    %v225 = vtanh.pop %v217
    %v226 = vtanh.pop %v218
    %v227 = vtanh.pop %v219
    %v228 = vtanh.pop %v220
    %v229 = vtanh.pop %v221
    %v230 = vtanh.pop %v222
    %v231 = vtanh.pop %v223
    %v232 = vtanh.pop %v224
    %v233 = vld [vmem:[%s5] sm:$0x1]
    %v235 = vperm.slane %v233, 0
    %v237 = vmul.f32 %v225, %v235
    %v238 = vmul.f32 %v226, %v235
    %v239 = vmul.f32 %v227, %v235
    %v240 = vmul.f32 %v228, %v235
    %v241 = vmul.f32 %v229, %v235
    %v242 = vmul.f32 %v230, %v235
    %v243 = vmul.f32 %v231, %v235
    %v244 = vmul.f32 %v232, %v235
    %v245 = vsel %vm174, %v237, 0.0
    %246 = vadd.xlane.f32.xlu0 %v245
    %v247 = vpop.xlane.xlu0 %246
    %v248 = vsel %vm174, %v238, 0.0
    %249 = vadd.xlane.f32.xlu0 %v248
    %v250 = vpop.xlane.xlu0 %249
    %v251 = vsel %vm174, %v239, 0.0
    %252 = vadd.xlane.f32.xlu0 %v251
    %v253 = vpop.xlane.xlu0 %252
    %v254 = vsel %vm174, %v240, 0.0
    %255 = vadd.xlane.f32.xlu0 %v254
    %v256 = vpop.xlane.xlu0 %255
    %v257 = vsel %vm174, %v241, 0.0
    %258 = vadd.xlane.f32.xlu0 %v257
    %v259 = vpop.xlane.xlu0 %258
    %v260 = vsel %vm174, %v242, 0.0
    %261 = vadd.xlane.f32.xlu0 %v260
    %v262 = vpop.xlane.xlu0 %261
    %v263 = vsel %vm174, %v243, 0.0
    %264 = vadd.xlane.f32.xlu0 %v263
    %v265 = vpop.xlane.xlu0 %264
    %v266 = vsel %vm174, %v244, 0.0
    %267 = vadd.xlane.f32.xlu0 %v266
    %v268 = vpop.xlane.xlu0 %267
    %v277 = vlaneseq
    %v278 = vand.u32 %v277, 127
    %v279 = vperm.slane %v247, %v278
    %v280 = vperm.slane %v250, %v278
    %v281 = vperm.slane %v253, %v278
    %v282 = vperm.slane %v256, %v278
    %v283 = vperm.slane %v259, %v278
    %v284 = vperm.slane %v262, %v278
    %v285 = vperm.slane %v265, %v278
    %v286 = vperm.slane %v268, %v278
    %vm287 = vcmask 1041409
    %v288 = vsel %vm287, %v280, %v279
    %vm289 = vcmask 1042434
    %v290 = vsel %vm289, %v281, %v288
    %vm291 = vcmask 1043459
    %v292 = vsel %vm291, %v282, %v290
    %vm293 = vcmask 1044484
    %v294 = vsel %vm293, %v283, %v292
    %vm295 = vcmask 1045509
    %v296 = vsel %vm295, %v284, %v294
    %vm297 = vcmask 1046534
    %v298 = vsel %vm297, %v285, %v296
    %vm299 = vcmask 1047559
    %v300 = vsel %vm299, %v286, %v298
    %302 = vxpose.xlu0.b32.start [1/16] %v300, 128
    %303 = vxpose.xlu0.b32.cont [2/16] 0.0, 128
    %304 = vxpose.xlu0.b32.cont [3/16] 0.0, 128
    %305 = vxpose.xlu0.b32.cont [4/16] 0.0, 128
    %306 = vxpose.xlu0.b32.cont [5/16] 0.0, 128
    %307 = vxpose.xlu0.b32.cont [6/16] 0.0, 128
    %308 = vxpose.xlu0.b32.cont [7/16] 0.0, 128
    %309 = vxpose.xlu0.b32.cont [8/16] 0.0, 128
    %310 = vxpose.xlu0.b32.cont [9/16] 0.0, 128
    %311 = vxpose.xlu0.b32.cont [10/16] 0.0, 128
    %312 = vxpose.xlu0.b32.cont [11/16] 0.0, 128
    %313 = vxpose.xlu0.b32.cont [12/16] 0.0, 128
    %314 = vxpose.xlu0.b32.cont [13/16] 0.0, 128
    %315 = vxpose.xlu0.b32.cont [14/16] 0.0, 128
    %316 = vxpose.xlu0.b32.cont [15/16] 0.0, 128
    %317 = vxpose.xlu0.b32.end [16/16] 0.0, 128
    %v318 = vpop.trf.xlu0
    %v319 = vpop.trf.xlu0
    %v320 = vpop.trf.xlu0
    %v321 = vpop.trf.xlu0
    %v322 = vpop.trf.xlu0
    %v323 = vpop.trf.xlu0
    %v324 = vpop.trf.xlu0
    %v325 = vpop.trf.xlu0
    %v326 = vpop.trf.xlu0
    %v327 = vpop.trf.xlu0
    %v328 = vpop.trf.xlu0
    %v329 = vpop.trf.xlu0
    %v330 = vpop.trf.xlu0
    %v331 = vpop.trf.xlu0
    %v332 = vpop.trf.xlu0
    %v333 = vpop.trf.xlu0
    %vm334 = vcmask 64512
    %335 = vst.msk [vmem:[#allocation3] sm:$0xff] %vm334, %v318
    // Predicated region
    $region46: #{tpu_custom_call.1} parent=1 // pred_check
      %p336 = pneg %p86
    $region47: #{tpu_custom_call.1} parent=1 // pred_check_branch
      %338 = sbr.rel (%p336) target = $region49
    $region48: #{tpu_custom_call.1} parent=1 // pred_region
      %vm339 = vcmp.lt.s32.totalorder %v278, 8
      %v340 = vld [vmem:[#allocation3] sm:$0xff]
      %v341 = vsel %vm339, %v340, -1e+30
      %342 = vmax.xlane.f32.xlu0 %v341
      %v343 = vpop.xlane.xlu0 %342
      %v344 = vsub.f32 %v341, %v343
      %v345 = vmul.f32 %v344, 1.442695
      %v346 = vpow.pop %v345
      %347 = vadd.xlane.f32.xlu0 %v346
      %v348 = vpop.xlane.xlu0 %347
      %v349 = vrcp.pop %v348
      %v350 = vmul.f32 %v346, %v349
      %351 = vst [vmem:[#allocation12] sm:$0xff] %v350
    $region49: #{tpu_custom_call.1} parent=1 // pred_fallthru
      _
    // Predicated region
    $region50: #{tpu_custom_call.1} parent=1 // pred_check
      _
    $region51: #{tpu_custom_call.1} parent=1 // pred_check_branch
      %353 = sbr.rel (0) target = $region53
    $region52: #{tpu_custom_call.1} parent=1 // pred_region
      %355 = vsyncadd [#allocation6], 0
      %s357 = sshll.u32 [#allocation12], 4
      %s358 = int_to_ptr.vmem [resolvable:$true] %s357
      %s359 = sshll.u32 %s6, 4
      %s360 = int_to_ptr.hbm [resolvable:$true] %s359
      %362 = dma.vmem_to_hbm [thread:$0]  %s358, 128, %s360, [#allocation6]
    $region53: #{tpu_custom_call.1} parent=1 // pred_fallthru
      _
    // Predicated region
    $region54: #{tpu_custom_call.1} parent=1 // pred_check
      _
    $region55: #{tpu_custom_call.1} parent=1 // pred_check_branch
      %364 = sbr.rel (0) target = $region57
    $region56: #{tpu_custom_call.1} parent=1 // pred_region
      %366 = dma.done [#allocation6], 128
    $region57: #{tpu_custom_call.1} parent=1 // pred_fallthru
      _
    %367 = vsyncpa [#allocation5], 1
    %368 = vsyncpa [#allocation8], 1
    %369 = vsyncpa [#allocation11], 1
    %370 = vsyncpa [#allocation6], 1

</llo_original>
